<compile_context>
chip_gen: v7x
topology: tpu7x:2x2x1
jax: 0.10.0
libtpu: 0.0.40
codegen_flags: <defaults>
</compile_context>

<pallas_src>
import functools
import math

import jax
import jax.numpy as jnp
from jax import lax
from jax.experimental import pallas as pl
from jax.experimental.pallas import tpu as pltpu

_NUM_SPLITS = 2        # leading "parallel" grid axis (2 TensorCores on v7x)
_OUT_SUBLANES = 8      # per-split output tile (8, 128): always a legal VMEM block
_OUT_LANES = 128


def _uw_kernel(pred_ref, tgt_ref, logits_ref, labels_ref, out_ref, acc_ref, *,
               n_rows, tile_rows, blocks_per_split, needs_mask, fast_diff):
    split = pl.program_id(0)                   # parallel axis (per-TensorCore on v7x)
    step = pl.program_id(1)                    # arbitrary axis (streaming MSE reduction)
    last = blocks_per_split - 1
    base_row = (split * blocks_per_split + step) * tile_rows   # unclamped row origin

    @pl.when(step == 0)
    def _init():
        acc_ref[...] = jnp.zeros_like(acc_ref)

    # ---- task 0: MSE partial sums, kept in vector form (no per-tile scalar chain) ----
    def _accumulate(apply_row_mask):
        p = pred_ref[...]
        t = tgt_ref[...]
        if fast_diff and pred_ref.dtype != jnp.float32:
            diff = (p - t).astype(jnp.float32)            # low-precision sub, widen once
        else:
            diff = p.astype(jnp.float32) - t.astype(jnp.float32)
        sq = diff * diff
        if apply_row_mask:
            rows = base_row + lax.broadcasted_iota(jnp.int32, sq.shape, 0)
            sq = jnp.where(rows < n_rows, sq, 0.0)
        if tile_rows % 8 == 0:
            # (tile_rows, L) -> (tile_rows//8, 8, L): leading-dim split is layout-free;
            # the axis-0 reduction is pure vreg adds (no cross-lane work per tile).
            acc_ref[...] += sq.reshape(tile_rows // 8, 8, -1).sum(axis=0)
        else:                                   # tiny-input corner: tile_rows == n_rows < 8
            acc_ref[...] += jnp.sum(sq, axis=0, keepdims=True)

    if needs_mask:
        # Only the ragged last block / phantom blocks pay the per-element mask.
        is_tail = base_row + tile_rows > n_rows

        @pl.when(jnp.logical_not(is_tail))
        def _interior():
            _accumulate(False)

        @pl.when(is_tail)
        def _tail():
            _accumulate(True)
    else:
        _accumulate(False)

    # ---- finalize: this split's raw sum-of-squares goes to out[0, 0] ----
    @pl.when(step == last)
    def _write_mse_partial():
        ssq = jnp.sum(acc_ref[...])                       # single cross-lane reduce
        row = lax.broadcasted_iota(jnp.int32, out_ref.shape, 0)
        col = lax.broadcasted_iota(jnp.int32, out_ref.shape, 1)
        out_ref[...] = jnp.where((row == 0) & (col == 0), ssq, 0.0)

    # ---- task 1: CrossEntropy (mean NLL), computed once on split 0 -> out[0, 1] ----
    @pl.when((step == last) & (split == 0))
    def _write_ce():
        logits = logits_ref[...].astype(jnp.float32)                              # (N, K)
        m = jnp.max(logits, axis=-1, keepdims=True)
        lse = jnp.log(jnp.sum(jnp.exp(logits - m), axis=-1, keepdims=True)) + m   # (N, 1)
        classes = lax.broadcasted_iota(jnp.int32, logits.shape, 1)
        picked = jnp.sum(jnp.where(classes == labels_ref[...], logits, 0.0),
                         axis=-1, keepdims=True)                                  # (N, 1)
        ce_mean = jnp.mean(lse - picked)
        row = lax.broadcasted_iota(jnp.int32, out_ref.shape, 0)
        col = lax.broadcasted_iota(jnp.int32, out_ref.shape, 1)
        out_ref[...] = jnp.where((row == 0) & (col == 1), ce_mean, out_ref[...])


def _choose_layout(shape):
    """Zero-copy 2-D view (rows, lanes) of the regression tensors; lanes is a multiple
    of 128 whenever the element count allows (full vregs, contiguous tile DMA)."""
    total = 1
    for d in shape:
        total *= int(d)
    for lanes in (1024, 512, 256, 128):
        if total % lanes == 0 and total // lanes >= 8:
            return total // lanes, lanes
    for lanes in (1024, 512, 256, 128):
        if total % lanes == 0:
            return total // lanes, lanes
    # No 128-multiple factor at all (e.g. 7x7 feature maps with odd batch): fall back
    # to [B*C, H*W] -- still zero-copy, just not lane-dense.
    # TODO(synk): lanes < 128 leaves vregs partially filled for such shapes.
    if len(shape) == 4:
        return int(shape[0]) * int(shape[1]), int(shape[2]) * int(shape[3])
    return total // int(shape[-1]), int(shape[-1])


def _vmem_capacity_bytes():
    try:
        return int(pltpu.get_tpu_info().vmem_capacity_bytes)
    except Exception:                     # conservative fallback
        return 64 * 2**20                 # assume v7x-sized (per-core) VMEM


def _choose_tile_rows(n_rows, lanes, itemsize, tile_budget_bytes):
    """Largest legal row tile: a multiple of 8 (or the full row count when rows < 8),
    capped so both parallel splits get at least one block when possible."""
    if n_rows < 8:
        return n_rows                                   # full-dim block is always legal
    rows_fit = (tile_budget_bytes // max(1, lanes * itemsize)) // 8 * 8
    rows_fit = max(8, rows_fit)
    if n_rows >= 8 * _NUM_SPLITS:
        per_split = -(-n_rows // _NUM_SPLITS)
        rows_fit = min(rows_fit, -(-per_split // 8) * 8)
    return min(rows_fit, (n_rows // 8) * 8)


@functools.partial(jax.jit, static_argnames=("fast_low_precision_diff",))
def uncertainty_weighted_criterion(log_variance, pred_nchw, tgt_nchw, logits, labels,
                                   fast_low_precision_diff=False):
    """Returns (total_loss, {'mse': ..., 'ce': ...}) like the PyTorch module's forward."""
    total_elems = 1
    for d in pred_nchw.shape:
        total_elems *= int(d)
    n_rows, lanes = _choose_layout(pred_nchw.shape)

    # Contiguous (metadata-only) reshapes -- no jnp.pad, no extra HBM pass.
    pred2d = pred_nchw.reshape(n_rows, lanes)
    tgt2d = tgt_nchw.reshape(n_rows, lanes)
    labels2d = labels.reshape(-1, 1).astype(jnp.int32)
    n_cls, k_cls = logits.shape

    itemsize = jnp.dtype(pred2d.dtype).itemsize
    vmem_cap = _vmem_capacity_bytes()
    if vmem_cap >= 100 * 2**20:            # v5e / v6e: 128 MiB physical VMEM
        tile_budget, vmem_ceiling = 8 * 2**20, 96 * 2**20
    else:                                  # v7x: 64 MiB per TensorCore
        tile_budget, vmem_ceiling = 4 * 2**20, 52 * 2**20

    tile_rows = _choose_tile_rows(n_rows, lanes, itemsize, tile_budget)
    num_blocks = -(-n_rows // tile_rows)
    blocks_per_split = -(-num_blocks // _NUM_SPLITS)
    needs_mask = (_NUM_SPLITS * blocks_per_split * tile_rows != n_rows)
    acc_rows = 8 if tile_rows % 8 == 0 else 1

    # VMEM budget: pred/tgt double-buffered + resident logits/labels (+ 2nd pipeline
    # buffer) + lane-wise accumulator + headroom.
    # TODO(synk): pipeline_mode=pl.Buffered(1) on the constant-index logits/labels specs
    # would halve their VMEM footprint on v7x; omitted to keep broad version support.
    # TODO(synk): for very large (N, K) logits, tile the CE term over N with a second
    # accumulator instead of keeping the whole logits tensor resident in VMEM.
    tile_bytes = tile_rows * lanes * itemsize
    aux_bytes = 2 * (logits.size * jnp.dtype(logits.dtype).itemsize + labels2d.size * 4)
    needed = 4 * tile_bytes + aux_bytes + acc_rows * lanes * 4 + (2 << 20)
    vmem_limit = int(min(max(needed, 32 * 2**20), vmem_ceiling))

    def mse_block_map(c, i):
        # Clamp so a phantom block (odd block count split across 2 cores) never issues
        # an out-of-bounds DMA; its contribution is masked to zero in-kernel.
        return (jnp.minimum(c * blocks_per_split + i, num_blocks - 1), 0)

    kernel = functools.partial(
        _uw_kernel,
        n_rows=n_rows,
        tile_rows=tile_rows,
        blocks_per_split=blocks_per_split,
        needs_mask=needs_mask,
        fast_diff=fast_low_precision_diff,
    )

    partials = pl.pallas_call(
        kernel,
        out_shape=jax.ShapeDtypeStruct((_NUM_SPLITS * _OUT_SUBLANES, _OUT_LANES),
                                       jnp.float32),
        grid=(_NUM_SPLITS, blocks_per_split),
        in_specs=[
            pl.BlockSpec((tile_rows, lanes), mse_block_map),          # pred tile
            pl.BlockSpec((tile_rows, lanes), mse_block_map),          # target tile
            pl.BlockSpec((n_cls, k_cls), lambda c, i: (0, 0)),        # logits (resident)
            pl.BlockSpec((n_cls, 1), lambda c, i: (0, 0)),            # labels (resident)
        ],
        out_specs=pl.BlockSpec((_OUT_SUBLANES, _OUT_LANES), lambda c, i: (c, 0)),
        scratch_shapes=[pltpu.VMEM((acc_rows, lanes), jnp.float32)],  # lane-wise sum-of-sq
        compiler_params=pltpu.CompilerParams(
            dimension_semantics=("parallel", "arbitrary"),
            vmem_limit_bytes=vmem_limit,
        ),
    )(pred2d, tgt2d, logits, labels2d)

    # Tiny scalar epilogue: combine per-split partials + uncertainty weighting.
    sum_sq = partials[::_OUT_SUBLANES, 0].sum()
    ce = partials[0, 1]
    mse = sum_sq / float(total_elems)
    lv = log_variance.astype(jnp.float32)
    w_mse = 0.5 * jnp.exp(-lv[0]) * mse
    w_ce = jnp.exp(-lv[1]) * ce
    total = w_mse + w_ce + 0.5 * (lv[0] + lv[1])
    return total, {"mse": w_mse, "ce": w_ce}


def _reference(log_variance, pred, tgt, logits, labels):
    mse = jnp.mean((pred.astype(jnp.float32) - tgt.astype(jnp.float32)) ** 2)
    logp = jax.nn.log_softmax(logits.astype(jnp.float32), axis=-1)
    ce = -jnp.mean(jnp.take_along_axis(logp, labels[:, None], axis=-1))
    w_mse = 1.0 / (2.0 * jnp.exp(log_variance[0])) * mse
    w_ce = 1.0 / jnp.exp(log_variance[1]) * ce
    return w_mse + w_ce + 0.5 * (log_variance[0] + log_variance[1]), w_mse, w_ce


if __name__ == "__main__":
    key = jax.random.PRNGKey(0)
    k1, k2, k3, k4 = jax.random.split(key, 4)

    # Deterministic parameter init, mirroring __init__ with initial_weights=[1., 1.]
    #   MSE          -> log(1 / (2*w)) = -log(2)
    #   CrossEntropy -> log(1 / w)     = 0
    initial_weights = (1.0, 1.0)
    log_variance = jnp.array(
        [math.log(1.0 / (2.0 * initial_weights[0])),
         math.log(1.0 / initial_weights[1])], dtype=jnp.float32)

    # Task 0 (MSE): NCHW regression tensors.
    B, C, H, W = 2, 4, 16, 16
    pred = jax.random.normal(k1, (B, C, H, W), dtype=jnp.float32)
    tgt = jax.random.normal(k2, (B, C, H, W), dtype=jnp.float32)

    # Task 1 (CrossEntropy): [N, K] logits, int targets.
    N, K = 8, 16
    logits = jax.random.normal(k3, (N, K), dtype=jnp.float32)
    labels = jax.random.randint(k4, (N,), 0, K, dtype=jnp.int32)

    total, split = uncertainty_weighted_criterion(log_variance, pred, tgt, logits, labels)
    jax.block_until_ready(total)

    ref_total, ref_mse, ref_ce = _reference(log_variance, pred, tgt, logits, labels)
    assert jnp.allclose(total, ref_total, atol=1e-4), (total, ref_total)
    assert jnp.allclose(split["mse"], ref_mse, atol=1e-4)
    assert jnp.allclose(split["ce"], ref_ce, atol=1e-4)

    print("KERNEL_OK")
</pallas_src>

<mosaic_0001>
module attributes {stable_mosaic.version = 11 : i64} {
  func.func @_uw_kernel(%arg0: i32, %arg1: i32, %arg2: memref<8x256xf32, #tpu.memory_space<vmem>>, %arg3: memref<8x256xf32, #tpu.memory_space<vmem>>, %arg4: memref<8x16xf32, #tpu.memory_space<vmem>>, %arg5: memref<8x1xi32, #tpu.memory_space<vmem>>, %arg6: memref<8x128xf32, #tpu.memory_space<vmem>>, %arg7: memref<8x256xf32, #tpu.memory_space<vmem>>) attributes {dimension_semantics = [#tpu.dimension_semantics<parallel>, #tpu.dimension_semantics<arbitrary>], iteration_bounds = array<i64: 2, 1>, scalar_prefetch = 0 : i64, scratch_operands = 1 : i64, tpu.core_type = #tpu.core_type<tc>, window_params = [{transform_indices = @transform_0, window_bounds = array<i64: 8, 256>}, {transform_indices = @transform_1, window_bounds = array<i64: 8, 256>}, {pipeline_mode = #tpu.pipeline_mode<synchronous>, transform_indices = @transform_2, window_bounds = array<i64: 8, 16>}, {pipeline_mode = #tpu.pipeline_mode<synchronous>, transform_indices = @transform_3, window_bounds = array<i64: 8, 1>}, {transform_indices = @transform_4, window_bounds = array<i64: 8, 128>}]} {
    %c1_i32 = arith.constant 1 : i32
    %0 = arith.muli %arg0, %c1_i32 : i32
    %1 = arith.addi %0, %arg1 : i32
    %c8_i32 = arith.constant 8 : i32
    %2 = arith.muli %1, %c8_i32 : i32
    %c0_i32 = arith.constant 0 : i32
    %3 = arith.cmpi eq, %arg1, %c0_i32 : i32
    %4 = arith.extui %3 : i1 to i32
    %c0_i32_0 = arith.constant 0 : i32
    %5 = arith.cmpi ne, %4, %c0_i32_0 : i32
    scf.if %5 {
      %cst = arith.constant 0.000000e+00 : f32
      %21 = vector.broadcast %cst : f32 to vector<8x256xf32>
      %c0 = arith.constant 0 : index
      %c0_10 = arith.constant 0 : index
      %22 = vector.load %arg7[%c0, %c0_10] : memref<8x256xf32, #tpu.memory_space<vmem>>, vector<8x256xf32>
      tpu.vector_store %arg7[%c0, %c0_10], %21 {strides = array<i32>} : memref<8x256xf32, #tpu.memory_space<vmem>>, vector<8x256xf32>,
    } else {
    }
    %c8_i32_1 = arith.constant 8 : i32
    %6 = arith.addi %2, %c8_i32_1 : i32
    %c8_i32_2 = arith.constant 8 : i32
    %7 = arith.cmpi sgt, %6, %c8_i32_2 : i32
    %true = arith.constant true
    %8 = arith.xori %7, %true : i1
    %9 = arith.extui %8 : i1 to i32
    %c0_i32_3 = arith.constant 0 : i32
    %10 = arith.cmpi ne, %9, %c0_i32_3 : i32
    scf.if %10 {
      %c0 = arith.constant 0 : index
      %c0_10 = arith.constant 0 : index
      %21 = vector.load %arg2[%c0, %c0_10] : memref<8x256xf32, #tpu.memory_space<vmem>>, vector<8x256xf32>
      %c0_11 = arith.constant 0 : index
      %c0_12 = arith.constant 0 : index
      %22 = vector.load %arg3[%c0_11, %c0_12] : memref<8x256xf32, #tpu.memory_space<vmem>>, vector<8x256xf32>
      %23 = arith.subf %21, %22 : vector<8x256xf32>
      %24 = arith.mulf %23, %23 : vector<8x256xf32>
      %c0_13 = arith.constant 0 : index
      %c0_14 = arith.constant 0 : index
      %25 = vector.load %arg7[%c0_13, %c0_14] : memref<8x256xf32, #tpu.memory_space<vmem>>, vector<8x256xf32>
      %26 = vector.shape_cast %24 : vector<8x256xf32> to vector<1x8x256xf32>
      %cst = arith.constant dense<0.000000e+00> : vector<8x256xf32>
      %27 = vector.multi_reduction <add>, %26, %cst [0] : vector<1x8x256xf32> to vector<8x256xf32>
      %28 = arith.addf %25, %27 : vector<8x256xf32>
      %c0_15 = arith.constant 0 : index
      %c0_16 = arith.constant 0 : index
      %29 = vector.load %arg7[%c0_15, %c0_16] : memref<8x256xf32, #tpu.memory_space<vmem>>, vector<8x256xf32>
      tpu.vector_store %arg7[%c0_15, %c0_16], %28 {strides = array<i32>} : memref<8x256xf32, #tpu.memory_space<vmem>>, vector<8x256xf32>,
    } else {
    }
    %11 = arith.extui %7 : i1 to i32
    %c0_i32_4 = arith.constant 0 : i32
    %12 = arith.cmpi ne, %11, %c0_i32_4 : i32
    scf.if %12 {
      %c0 = arith.constant 0 : index
      %c0_10 = arith.constant 0 : index
      %21 = vector.load %arg2[%c0, %c0_10] : memref<8x256xf32, #tpu.memory_space<vmem>>, vector<8x256xf32>
      %c0_11 = arith.constant 0 : index
      %c0_12 = arith.constant 0 : index
      %22 = vector.load %arg3[%c0_11, %c0_12] : memref<8x256xf32, #tpu.memory_space<vmem>>, vector<8x256xf32>
      %23 = arith.subf %21, %22 : vector<8x256xf32>
      %24 = arith.mulf %23, %23 : vector<8x256xf32>
      %25 = tpu.iota {dimensions = array<i32: 0>} : vector<8x256xi32>
      %26 = vector.broadcast %2 : i32 to vector<8x256xi32>
      %27 = arith.addi %26, %25 : vector<8x256xi32>
      %c8_i32_13 = arith.constant 8 : i32
      %28 = vector.broadcast %c8_i32_13 : i32 to vector<8x256xi32>
      %29 = arith.cmpi slt, %27, %28 : vector<8x256xi32>
      %cst = arith.constant 0.000000e+00 : f32
      %30 = vector.broadcast %cst : f32 to vector<8x256xf32>
      %31 = arith.select %29, %24, %30 : vector<8x256xi1>, vector<8x256xf32>
      %c0_14 = arith.constant 0 : index
      %c0_15 = arith.constant 0 : index
      %32 = vector.load %arg7[%c0_14, %c0_15] : memref<8x256xf32, #tpu.memory_space<vmem>>, vector<8x256xf32>
      %33 = vector.shape_cast %31 : vector<8x256xf32> to vector<1x8x256xf32>
      %cst_16 = arith.constant dense<0.000000e+00> : vector<8x256xf32>
      %34 = vector.multi_reduction <add>, %33, %cst_16 [0] : vector<1x8x256xf32> to vector<8x256xf32>
      %35 = arith.addf %32, %34 : vector<8x256xf32>
      %c0_17 = arith.constant 0 : index
      %c0_18 = arith.constant 0 : index
      %36 = vector.load %arg7[%c0_17, %c0_18] : memref<8x256xf32, #tpu.memory_space<vmem>>, vector<8x256xf32>
      tpu.vector_store %arg7[%c0_17, %c0_18], %35 {strides = array<i32>} : memref<8x256xf32, #tpu.memory_space<vmem>>, vector<8x256xf32>,
    } else {
    }
    %c0_i32_5 = arith.constant 0 : i32
    %13 = arith.cmpi eq, %arg1, %c0_i32_5 : i32
    %14 = arith.extui %13 : i1 to i32
    %c0_i32_6 = arith.constant 0 : i32
    %15 = arith.cmpi ne, %14, %c0_i32_6 : i32
    scf.if %15 {
      %c0 = arith.constant 0 : index
      %c0_10 = arith.constant 0 : index
      %21 = vector.load %arg7[%c0, %c0_10] : memref<8x256xf32, #tpu.memory_space<vmem>>, vector<8x256xf32>
      %22 = vector.shape_cast %21 : vector<8x256xf32> to vector<1x8x256xf32>
      %cst = arith.constant dense<0.000000e+00> : vector<1xf32>
      %23 = vector.multi_reduction <add>, %22, %cst [1, 2] : vector<1x8x256xf32> to vector<1xf32>
      %24 = vector.shape_cast %23 : vector<1xf32> to vector<1x1x1xf32>
      %25 = vector.extract %24[0, 0, 0] : f32 from vector<1x1x1xf32>
      %26 = tpu.iota {dimensions = array<i32: 0>} : vector<8x128xi32>
      %27 = tpu.iota {dimensions = array<i32: 1>} : vector<8x128xi32>
      %c0_i32_11 = arith.constant 0 : i32
      %28 = vector.broadcast %c0_i32_11 : i32 to vector<8x128xi32>
      %29 = arith.cmpi eq, %26, %28 : vector<8x128xi32>
      %c0_i32_12 = arith.constant 0 : i32
      %30 = vector.broadcast %c0_i32_12 : i32 to vector<8x128xi32>
      %31 = arith.cmpi eq, %27, %30 : vector<8x128xi32>
      %32 = arith.andi %29, %31 : vector<8x128xi1>
      %cst_13 = arith.constant 0.000000e+00 : f32
      %33 = vector.broadcast %25 : f32 to vector<8x128xf32>
      %34 = vector.broadcast %cst_13 : f32 to vector<8x128xf32>
      %35 = arith.select %32, %33, %34 : vector<8x128xi1>, vector<8x128xf32>
      %c0_14 = arith.constant 0 : index
      %c0_15 = arith.constant 0 : index
      %36 = vector.load %arg6[%c0_14, %c0_15] : memref<8x128xf32, #tpu.memory_space<vmem>>, vector<8x128xf32>
      tpu.vector_store %arg6[%c0_14, %c0_15], %35 {strides = array<i32>} : memref<8x128xf32, #tpu.memory_space<vmem>>, vector<8x128xf32>,
    } else {
    }
    %c0_i32_7 = arith.constant 0 : i32
    %16 = arith.cmpi eq, %arg1, %c0_i32_7 : i32
    %c0_i32_8 = arith.constant 0 : i32
    %17 = arith.cmpi eq, %arg0, %c0_i32_8 : i32
    %18 = arith.andi %16, %17 : i1
    %19 = arith.extui %18 : i1 to i32
    %c0_i32_9 = arith.constant 0 : i32
    %20 = arith.cmpi ne, %19, %c0_i32_9 : i32
    scf.if %20 {
      %c0 = arith.constant 0 : index
      %c0_10 = arith.constant 0 : index
      %21 = vector.load %arg4[%c0, %c0_10] : memref<8x16xf32, #tpu.memory_space<vmem>>, vector<8x16xf32>
      %cst = arith.constant dense<0xFF800000> : vector<8xf32>
      %22 = vector.multi_reduction <maximumf>, %21, %cst [1] : vector<8x16xf32> to vector<8xf32>
      %23 = vector.shape_cast %22 : vector<8xf32> to vector<8x1xf32>
      %24 = vector.broadcast %23 : vector<8x1xf32> to vector<8x16xf32>
      %25 = arith.subf %21, %24 : vector<8x16xf32>
      %26 = math.exp %25 : vector<8x16xf32>
      %cst_11 = arith.constant dense<0.000000e+00> : vector<8xf32>
      %27 = vector.multi_reduction <add>, %26, %cst_11 [1] : vector<8x16xf32> to vector<8xf32>
      %28 = vector.shape_cast %27 : vector<8xf32> to vector<8x1xf32>
      %29 = math.log %28 : vector<8x1xf32>
      %30 = arith.addf %29, %23 : vector<8x1xf32>
      %31 = tpu.iota {dimensions = array<i32: 1>} : vector<8x16xi32>
      %c0_12 = arith.constant 0 : index
      %c0_13 = arith.constant 0 : index
      %32 = vector.load %arg5[%c0_12, %c0_13] : memref<8x1xi32, #tpu.memory_space<vmem>>, vector<8x1xi32>
      %33 = vector.broadcast %32 : vector<8x1xi32> to vector<8x16xi32>
      %34 = arith.cmpi eq, %31, %33 : vector<8x16xi32>
      %cst_14 = arith.constant 0.000000e+00 : f32
      %35 = vector.broadcast %cst_14 : f32 to vector<8x16xf32>
      %36 = arith.select %34, %21, %35 : vector<8x16xi1>, vector<8x16xf32>
      %cst_15 = arith.constant dense<0.000000e+00> : vector<8xf32>
      %37 = vector.multi_reduction <add>, %36, %cst_15 [1] : vector<8x16xf32> to vector<8xf32>
      %38 = vector.shape_cast %37 : vector<8xf32> to vector<8x1xf32>
      %39 = arith.subf %30, %38 : vector<8x1xf32>
      %40 = vector.shape_cast %39 : vector<8x1xf32> to vector<1x8x1xf32>
      %cst_16 = arith.constant dense<0.000000e+00> : vector<1xf32>
      %41 = vector.multi_reduction <add>, %40, %cst_16 [1, 2] : vector<1x8x1xf32> to vector<1xf32>
      %42 = vector.shape_cast %41 : vector<1xf32> to vector<1x1x1xf32>
      %43 = vector.extract %42[0, 0, 0] : f32 from vector<1x1x1xf32>
      %cst_17 = arith.constant 8.000000e+00 : f32
      %44 = arith.divf %43, %cst_17 : f32
      %45 = tpu.iota {dimensions = array<i32: 0>} : vector<8x128xi32>
      %46 = tpu.iota {dimensions = array<i32: 1>} : vector<8x128xi32>
      %c0_i32_18 = arith.constant 0 : i32
      %47 = vector.broadcast %c0_i32_18 : i32 to vector<8x128xi32>
      %48 = arith.cmpi eq, %45, %47 : vector<8x128xi32>
      %c1_i32_19 = arith.constant 1 : i32
      %49 = vector.broadcast %c1_i32_19 : i32 to vector<8x128xi32>
      %50 = arith.cmpi eq, %46, %49 : vector<8x128xi32>
      %51 = arith.andi %48, %50 : vector<8x128xi1>
      %c0_20 = arith.constant 0 : index
      %c0_21 = arith.constant 0 : index
      %52 = vector.load %arg6[%c0_20, %c0_21] : memref<8x128xf32, #tpu.memory_space<vmem>>, vector<8x128xf32>
      %53 = vector.broadcast %44 : f32 to vector<8x128xf32>
      %54 = arith.select %51, %53, %52 : vector<8x128xi1>, vector<8x128xf32>
      %c0_22 = arith.constant 0 : index
      %c0_23 = arith.constant 0 : index
      %55 = vector.load %arg6[%c0_22, %c0_23] : memref<8x128xf32, #tpu.memory_space<vmem>>, vector<8x128xf32>
      tpu.vector_store %arg6[%c0_22, %c0_23], %54 {strides = array<i32>} : memref<8x128xf32, #tpu.memory_space<vmem>>, vector<8x128xf32>,
    } else {
    }
    return
  }
  func.func @transform_0(%arg0: i32, %arg1: i32) -> (i32, i32) {
    %c1_i32 = arith.constant 1 : i32
    %0 = arith.muli %arg0, %c1_i32 : i32
    %1 = arith.addi %0, %arg1 : i32
    %c0_i32 = arith.constant 0 : i32
    %2 = arith.minsi %1, %c0_i32 : i32
    %c0_i32_0 = arith.constant 0 : i32
    %c0_i32_1 = arith.constant 0 : i32
    return %2, %c0_i32_0 : i32, i32
  }
  func.func @transform_1(%arg0: i32, %arg1: i32) -> (i32, i32) {
    %c1_i32 = arith.constant 1 : i32
    %0 = arith.muli %arg0, %c1_i32 : i32
    %1 = arith.addi %0, %arg1 : i32
    %c0_i32 = arith.constant 0 : i32
    %2 = arith.minsi %1, %c0_i32 : i32
    %c0_i32_0 = arith.constant 0 : i32
    %c0_i32_1 = arith.constant 0 : i32
    return %2, %c0_i32_0 : i32, i32
  }
  func.func @transform_2(%arg0: i32, %arg1: i32) -> (i32, i32) {
    %c0_i32 = arith.constant 0 : i32
    %c0_i32_0 = arith.constant 0 : i32
    %c0_i32_1 = arith.constant 0 : i32
    return %c0_i32, %c0_i32_0 : i32, i32
  }
  func.func @transform_3(%arg0: i32, %arg1: i32) -> (i32, i32) {
    %c0_i32 = arith.constant 0 : i32
    %c0_i32_0 = arith.constant 0 : i32
    %c0_i32_1 = arith.constant 0 : i32
    return %c0_i32, %c0_i32_0 : i32, i32
  }
  func.func @transform_4(%arg0: i32, %arg1: i32) -> (i32, i32) {
    %c0_i32 = arith.constant 0 : i32
    %c0_i32_0 = arith.constant 0 : i32
    return %arg0, %c0_i32 : i32, i32
  }
}

</mosaic_0001>

<llo_original>
// kernel: uncertainty_weighted_criterion.1
$region0: #{uncertainty_weighted_criterion.1}
  #allocation0 [shape = 'u32[]', space=smem, size = 0x4, offset = 0x4, fixed_abs, tag = 'smem constant byte address 0x4 - core index']
  #allocation1 [shape = 'u32[144,128]{1,0:T(1,128)}', space=vmem, size = 0x12000, scoped, tag = 'internal scratch']
  #allocation2 [shape = 'f32[8,256]{1,0:T(8,128)}', space=vmem, size = 0x2000, scoped, tag = 'scratch operand']
  %s0 = inlined_call_operand.vmem [shape: f32[8,256], index: 0, kind: input, shape index: {}]
  %s1 = inlined_call_operand.vmem [shape: f32[8,256], index: 1, kind: input, shape index: {}]
  %s2 = inlined_call_operand.vmem [shape: f32[8,16], index: 2, kind: input, shape index: {}]
  %s3 = inlined_call_operand.vmem [shape: s32[8,1], index: 3, kind: input, shape index: {}]
  %s4 = inlined_call_operand.vmem [shape: f32[16,128], index: 4, kind: output, shape index: {}]
  %s5 = sld [smem:[#allocation0]]
  $region69: #{uncertainty_weighted_criterion.1} parent=0
    _
  %s7 = ssub.s32 1, %s5
  %s8 = scalar_select 0, %s7, %s5
  loop: start=0, step=1, limit=4
  $region2: #{uncertainty_weighted_criterion.1} parent=0 // loop_pre_header
    _
  $region3: #{uncertainty_weighted_criterion.1} parent=0 // loop_header
    %s10 = sphi 0, %s14
    %p11 = scmp.ge.s32.totalorder %s10, 4
    %s17 = sphi 0, %s29
    %s18 = sphi 0, %s25
    %s19 = sphi 0, %s17
    %s20 = sphi 0, %s18
    %s21 = sphi 0, %s19
    %s22 = sphi 0, %s20
    %s38 = sphi 0, %s40
    %s41 = sphi 0, %s38
    %s42 = sphi 0, %s41
    %s58 = sphi 0, %s42
    %s70 = sphi 0, %s72
    %s73 = sphi 0, %s70
    %s74 = sphi 0, %s73
    %s90 = sphi 0, %s74
    %s94 = sphi 0, %s94
    %s96 = sphi 0, %s94
    %s97 = sphi 0, %s96
    %s111 = sphi 0, %s97
    %s115 = sphi 0, %s115
    %s117 = sphi 0, %s115
    %s118 = sphi 0, %s117
    %s132 = sphi 0, %s118
    %s138 = sphi 0, %s140
    %s141 = sphi 0, %s138
    %s142 = sphi 0, %s141
    %s158 = sphi 0, %s142
  $region4: #{uncertainty_weighted_criterion.1} parent=0 // loop_header_branch
    %13 = sbr.rel (%p11) target = $region8
  $region5: #{uncertainty_weighted_criterion.1} parent=0 // loop_body
    %s15 = ssub.s32 %s10, 1
    %s16 = ssub.s32 %s10, 2
    %s23 = sadd.s32 1, %s18
    %p24 = scmp.ge.s32.totalorder %s23, 1
    %s25 = scalar_select %p24, 0, %s23
    %s26 = sadd.s32 1, %s17
    %s27 = scalar_select %p24, %s26, %s17
    %p28 = scmp.ge.s32.totalorder %s27, 2
    %s29 = scalar_select %p28, 0, %s27
    %s30 = sadd.s32 %s17, %s18
    %p31 = scmp.lt.s32.totalorder %s30, 0
    %s32 = scalar_select %p31, %s30, 0
    %s33 = sadd.s32 %s29, %s25
    %p34 = scmp.lt.s32.totalorder %s33, 0
    %s35 = scalar_select %p34, %s33, 0
    %s36 = ssub.s32 %s32, %s35
    %p37 = scmp.eq.s32.totalorder %s36, 0
    %s39 = sadd.s32 %s38, 1
    %s40 = scalar_select %p37, %s38, %s39
    %p43 = pneg %p37
    %p44 = scmp.eq.s32.totalorder %s10, 1
    %p45 = por %p43, %p44
    %p46 = scmp.ne.s32.totalorder %s38, %s41
    %p47 = scmp.eq.s32.totalorder %s10, 0
    %p48 = por %p46, %p47
    %p49 = scmp.ne.s32.totalorder %s38, %s41
    %p50 = scmp.eq.s32.totalorder %s15, 1
    %p51 = por %p49, %p50
    %p52 = scmp.ne.s32.totalorder %s41, %s42
    %p53 = scmp.eq.s32.totalorder %s15, 0
    %p54 = por %p52, %p53
    %p55 = scmp.ne.s32.totalorder %s41, %s42
    %p56 = scmp.eq.s32.totalorder %s16, 1
    %p57 = por %p55, %p56
    %p59 = scmp.ne.s32.totalorder %s42, %s58
    %p60 = scmp.eq.s32.totalorder %s16, 0
    %p61 = por %p59, %p60
    %s62 = sadd.s32 %s17, %s18
    %p63 = scmp.lt.s32.totalorder %s62, 0
    %s64 = scalar_select %p63, %s62, 0
    %s65 = sadd.s32 %s29, %s25
    %p66 = scmp.lt.s32.totalorder %s65, 0
    %s67 = scalar_select %p66, %s65, 0
    %s68 = ssub.s32 %s64, %s67
    %p69 = scmp.eq.s32.totalorder %s68, 0
    %s71 = sadd.s32 %s70, 1
    %s72 = scalar_select %p69, %s70, %s71
    %p75 = pneg %p69
    %p76 = scmp.eq.s32.totalorder %s10, 1
    %p77 = por %p75, %p76
    %p78 = scmp.ne.s32.totalorder %s70, %s73
    %p79 = scmp.eq.s32.totalorder %s10, 0
    %p80 = por %p78, %p79
    %p81 = scmp.ne.s32.totalorder %s70, %s73
    %p82 = scmp.eq.s32.totalorder %s15, 1
    %p83 = por %p81, %p82
    %p84 = scmp.ne.s32.totalorder %s73, %s74
    %p85 = scmp.eq.s32.totalorder %s15, 0
    %p86 = por %p84, %p85
    %p87 = scmp.ne.s32.totalorder %s73, %s74
    %p88 = scmp.eq.s32.totalorder %s16, 1
    %p89 = por %p87, %p88
    %p91 = scmp.ne.s32.totalorder %s74, %s90
    %p92 = scmp.eq.s32.totalorder %s16, 0
    %p93 = por %p91, %p92
    %s95 = sadd.s32 %s94, 1
    %p98 = scmp.eq.s32.totalorder %s10, 1
    %p99 = scmp.ne.s32.totalorder %s94, %s96
    %p100 = scmp.eq.s32.totalorder %s10, 0
    %p101 = por %p99, %p100
    %p102 = scmp.ne.s32.totalorder %s94, %s96
    %p103 = scmp.eq.s32.totalorder %s15, 1
    %p104 = por %p102, %p103
    %p105 = scmp.ne.s32.totalorder %s96, %s97
    %p106 = scmp.eq.s32.totalorder %s15, 0
    %p107 = por %p105, %p106
    %p108 = scmp.ne.s32.totalorder %s96, %s97
    %p109 = scmp.eq.s32.totalorder %s16, 1
    %p110 = por %p108, %p109
    %p112 = scmp.ne.s32.totalorder %s97, %s111
    %p113 = scmp.eq.s32.totalorder %s16, 0
    %p114 = por %p112, %p113
    %s116 = sadd.s32 %s115, 1
    %p119 = scmp.eq.s32.totalorder %s10, 1
    %p120 = scmp.ne.s32.totalorder %s115, %s117
    %p121 = scmp.eq.s32.totalorder %s10, 0
    %p122 = por %p120, %p121
    %p123 = scmp.ne.s32.totalorder %s115, %s117
    %p124 = scmp.eq.s32.totalorder %s15, 1
    %p125 = por %p123, %p124
    %p126 = scmp.ne.s32.totalorder %s117, %s118
    %p127 = scmp.eq.s32.totalorder %s15, 0
    %p128 = por %p126, %p127
    %p129 = scmp.ne.s32.totalorder %s117, %s118
    %p130 = scmp.eq.s32.totalorder %s16, 1
    %p131 = por %p129, %p130
    %p133 = scmp.ne.s32.totalorder %s118, %s132
    %p134 = scmp.eq.s32.totalorder %s16, 0
    %p135 = por %p133, %p134
    %s136 = ssub.s32 %s17, %s29
    %p137 = scmp.eq.s32.totalorder %s136, 0
    %s139 = sadd.s32 %s138, 1
    %s140 = scalar_select %p137, %s138, %s139
    %p143 = pneg %p137
    %p144 = scmp.eq.s32.totalorder %s10, 1
    %p145 = por %p143, %p144
    %p146 = scmp.ne.s32.totalorder %s138, %s141
    %p147 = scmp.eq.s32.totalorder %s10, 0
    %p148 = por %p146, %p147
    %p149 = scmp.ne.s32.totalorder %s138, %s141
    %p150 = scmp.eq.s32.totalorder %s15, 1
    %p151 = por %p149, %p150
    %p152 = scmp.ne.s32.totalorder %s141, %s142
    %p153 = scmp.eq.s32.totalorder %s15, 0
    %p154 = por %p152, %p153
    %p155 = scmp.ne.s32.totalorder %s141, %s142
    %p156 = scmp.eq.s32.totalorder %s16, 1
    %p157 = por %p155, %p156
    %p159 = scmp.ne.s32.totalorder %s142, %s158
    %p160 = scmp.eq.s32.totalorder %s16, 0
    %p161 = por %p159, %p160
    %p162 = scmp.le.s32.totalorder 1, %s10
    %p163 = scmp.lt.s32.totalorder %s10, 3
    %p164 = pnand %p162, %p163
    %p165 = pneg %p164
    // Predicated region
    $region9: #{uncertainty_weighted_criterion.1} parent=5 // pred_check
      _
    $region10: #{uncertainty_weighted_criterion.1} parent=5 // pred_check_branch
      %167 = sbr.rel (%p164) target = $region12
    $region11: #{uncertainty_weighted_criterion.1} parent=5 // pred_region
      %s168 = ssub.s32 %s10, 1
      // Predicated region
      $region13: #{uncertainty_weighted_criterion.1} parent=11 // pred_check
        %p169 = pneg %p107
      $region14: #{uncertainty_weighted_criterion.1} parent=11 // pred_check_branch
        %171 = sbr.rel (%p169) target = $region16
      $region15: #{uncertainty_weighted_criterion.1} parent=11 // pred_region
        _
      $region16: #{uncertainty_weighted_criterion.1} parent=11 // pred_fallthru
        _
      // Predicated region
      $region17: #{uncertainty_weighted_criterion.1} parent=11 // pred_check
        %p172 = pneg %p128
      $region18: #{uncertainty_weighted_criterion.1} parent=11 // pred_check_branch
        %174 = sbr.rel (%p172) target = $region20
      $region19: #{uncertainty_weighted_criterion.1} parent=11 // pred_region
        _
      $region20: #{uncertainty_weighted_criterion.1} parent=11 // pred_fallthru
        _
    $region12: #{uncertainty_weighted_criterion.1} parent=5 // pred_fallthru
      _
    %p175 = scmp.lt.s32.totalorder %s10, 2
    // Predicated region
    $region21: #{uncertainty_weighted_criterion.1} parent=5 // pred_check
      %p176 = pneg %p175
    $region22: #{uncertainty_weighted_criterion.1} parent=5 // pred_check_branch
      %178 = sbr.rel (%p176) target = $region24
    $region23: #{uncertainty_weighted_criterion.1} parent=5 // pred_region
      // Predicated region
      $region25: #{uncertainty_weighted_criterion.1} parent=23 // pred_check
        %p179 = pneg %p48
      $region26: #{uncertainty_weighted_criterion.1} parent=23 // pred_check_branch
        %181 = sbr.rel (%p179) target = $region28
      $region27: #{uncertainty_weighted_criterion.1} parent=23 // pred_region
        %s182 = sadd.s32 %s17, %s18
        %p183 = scmp.lt.s32.totalorder %s182, 0
        %s184 = scalar_select %p183, %s182, 0
        %p185 = scmp.lt.s32.totalorder %s184, 0
        %s186 = scalar_select %p185, %s184, 0
        %s187 = smul.addr %s186, 2
        %s188 = smul.addr %s187, 8
        %s189 = scalar_lea.vmem %s0, %s188
        %s190 = sadd.s32 %s17, %s18
        %p191 = scmp.lt.s32.totalorder %s190, 0
        %s192 = scalar_select %p191, %s190, 0
      $region28: #{uncertainty_weighted_criterion.1} parent=23 // pred_fallthru
        _
      // Predicated region
      $region29: #{uncertainty_weighted_criterion.1} parent=23 // pred_check
        %p193 = pneg %p80
      $region30: #{uncertainty_weighted_criterion.1} parent=23 // pred_check_branch
        %195 = sbr.rel (%p193) target = $region32
      $region31: #{uncertainty_weighted_criterion.1} parent=23 // pred_region
        %s196 = sadd.s32 %s17, %s18
        %p197 = scmp.lt.s32.totalorder %s196, 0
        %s198 = scalar_select %p197, %s196, 0
        %p199 = scmp.lt.s32.totalorder %s198, 0
        %s200 = scalar_select %p199, %s198, 0
        %s201 = smul.addr %s200, 2
        %s202 = smul.addr %s201, 8
        %s203 = scalar_lea.vmem %s1, %s202
        %s204 = sadd.s32 %s17, %s18
        %p205 = scmp.lt.s32.totalorder %s204, 0
        %s206 = scalar_select %p205, %s204, 0
      $region32: #{uncertainty_weighted_criterion.1} parent=23 // pred_fallthru
        _
    $region24: #{uncertainty_weighted_criterion.1} parent=5 // pred_fallthru
      _
    %p207 = scmp.le.s32.totalorder 1, %s10
    %p208 = scmp.lt.s32.totalorder %s10, 3
    %p209 = pnand %p207, %p208
    %p210 = pneg %p209
    // Predicated region
    $region33: #{uncertainty_weighted_criterion.1} parent=5 // pred_check
      _
    $region34: #{uncertainty_weighted_criterion.1} parent=5 // pred_check_branch
      %212 = sbr.rel (%p209) target = $region36
    $region35: #{uncertainty_weighted_criterion.1} parent=5 // pred_region
      %s213 = ssub.s32 %s10, 1
      %s214 = sadd.s32 %s19, %s20
      %p215 = scmp.lt.s32.totalorder %s214, 0
      %s216 = scalar_select %p215, %s214, 0
      %p217 = scmp.lt.s32.totalorder %s216, 0
      %s218 = scalar_select %p217, %s216, 0
      %s219 = smul.addr %s218, 2
      %s220 = smul.addr %s219, 8
      %s221 = scalar_lea.vmem %s0, %s220
      %p222 = pneg %p54
      %p223 = pneg %p51
      %s224 = sadd.s32 %s19, %s20
      %p225 = scmp.lt.s32.totalorder %s224, 0
      %s226 = scalar_select %p225, %s224, 0
      %p227 = scmp.lt.s32.totalorder %s226, 0
      %s228 = scalar_select %p227, %s226, 0
      %s229 = smul.addr %s228, 2
      %s230 = smul.addr %s229, 8
      %s231 = scalar_lea.vmem %s1, %s230
      %p232 = pneg %p86
      %p233 = pneg %p83
      %p234 = pneg %p107
      %p235 = pneg %p104
      %p236 = pneg %p128
      %p237 = pneg %p125
      %p238 = pneg %p154
      %p239 = pneg %p151
      %p240 = scmp.lt.s32.totalorder %s19, 1
      %s241 = scalar_select %p240, %s19, 1
      %s242 = smul.addr %s241, 8
      %s243 = scalar_lea.vmem %s4, %s242
      %s244 = sadd.s32 %s19, %s20
      %p245 = scmp.lt.s32.totalorder %s244, 0
      %s246 = scalar_select %p245, %s244, 0
      %p247 = scmp.lt.s32.totalorder %s246, 0
      %s248 = scalar_select %p247, %s246, 0
      %s249 = smul.addr %s248, 2
      %s250 = smul.addr %s249, 8
      %s251 = scalar_lea.vmem %s0, %s250
      %s252 = sadd.s32 %s19, %s20
      %p253 = scmp.lt.s32.totalorder %s252, 0
      %s254 = scalar_select %p253, %s252, 0
      %s255 = sadd.s32 %s19, %s20
      %p256 = scmp.lt.s32.totalorder %s255, 0
      %s257 = scalar_select %p256, %s255, 0
      %p258 = scmp.lt.s32.totalorder %s257, 0
      %s259 = scalar_select %p258, %s257, 0
      %s260 = smul.addr %s259, 2
      %s261 = smul.addr %s260, 8
      %s262 = scalar_lea.vmem %s1, %s261
      %s263 = sadd.s32 %s19, %s20
      %p264 = scmp.lt.s32.totalorder %s263, 0
      %s265 = scalar_select %p264, %s263, 0
      %p266 = scmp.lt.s32.totalorder %s19, 1
      %s267 = scalar_select %p266, %s19, 1
      %s268 = smul.addr %s267, 8
      %s269 = scalar_lea.vmem %s4, %s268
      %s270 = sadd.s32 %s19, %s20
      %s271 = smul.u32 %s270, 8
      %p272 = scmp.eq.s32.totalorder %s20, 0
      // Predicated region
      $region37: #{uncertainty_weighted_criterion.1} parent=35 // pred_check
        %p273 = pneg %p272
      $region38: #{uncertainty_weighted_criterion.1} parent=35 // pred_check_branch
        %275 = sbr.rel (%p273) target = $region40
      $region39: #{uncertainty_weighted_criterion.1} parent=35 // pred_region
        %276 = vst [vmem:[#allocation2] sm:$0xff] 0.0
        %277 = vst [vmem:[#allocation2 + $0x8] sm:$0xff] 0.0
      $region40: #{uncertainty_weighted_criterion.1} parent=35 // pred_fallthru
        _
      %s278 = sadd.s32 %s271, 8
      %p279 = scmp.gt.s32.totalorder %s278, 8
      %p280 = scmp.le.s32.totalorder %s278, 8
      // Predicated region
      $region41: #{uncertainty_weighted_criterion.1} parent=35 // pred_check
        %p281 = pneg %p280
      $region42: #{uncertainty_weighted_criterion.1} parent=35 // pred_check_branch
        %283 = sbr.rel (%p281) target = $region44
      $region43: #{uncertainty_weighted_criterion.1} parent=35 // pred_region
        %v284 = vld [vmem:[%s251] sm:$0xff]
        %v285 = vld [vmem:[%s251 + $0x8] sm:$0xff]
        %v286 = vld [vmem:[%s262] sm:$0xff]
        %v287 = vld [vmem:[%s262 + $0x8] sm:$0xff]
        %v288 = vsub.f32 %v284, %v286
        %v289 = vsub.f32 %v285, %v287
        %v290 = vmul.f32 %v288, %v288
        %v291 = vmul.f32 %v289, %v289
        %v292 = vld [vmem:[#allocation2] sm:$0xff]
        %v293 = vld [vmem:[#allocation2 + $0x8] sm:$0xff]
        %v294 = vadd.f32 %v290, 0.0
        %v295 = vadd.f32 %v291, 0.0
        %v296 = vadd.f32 %v292, %v294
        %v297 = vadd.f32 %v293, %v295
        %298 = vst [vmem:[#allocation2] sm:$0xff] %v296
        %299 = vst [vmem:[#allocation2 + $0x8] sm:$0xff] %v297
      $region44: #{uncertainty_weighted_criterion.1} parent=35 // pred_fallthru
        _
      // Predicated region
      $region45: #{uncertainty_weighted_criterion.1} parent=35 // pred_check
        %p300 = pneg %p279
      $region46: #{uncertainty_weighted_criterion.1} parent=35 // pred_check_branch
        %302 = sbr.rel (%p300) target = $region48
      $region47: #{uncertainty_weighted_criterion.1} parent=35 // pred_region
        %v303 = vld [vmem:[%s251] sm:$0xff]
        %v304 = vld [vmem:[%s251 + $0x8] sm:$0xff]
        %v305 = vld [vmem:[%s262] sm:$0xff]
        %v306 = vld [vmem:[%s262 + $0x8] sm:$0xff]
        %v307 = vsub.f32 %v303, %v305
        %v308 = vsub.f32 %v304, %v306
        %v309 = vmul.f32 %v307, %v307
        %v310 = vmul.f32 %v308, %v308
        %v311 = vlaneseq
        %v312 = vshrl.u32 %v311, 7
        %v313 = vstv %s271
        %v314 = vadd.s32 %v313, %v312
        %vm315 = vcmp.lt.s32.totalorder %v314, 8
        %v316 = vsel %vm315, %v309, 0.0
        %v317 = vsel %vm315, %v310, 0.0
        %v318 = vld [vmem:[#allocation2] sm:$0xff]
        %v319 = vld [vmem:[#allocation2 + $0x8] sm:$0xff]
        %v320 = vadd.f32 %v316, 0.0
        %v321 = vadd.f32 %v317, 0.0
        %v322 = vadd.f32 %v318, %v320
        %v323 = vadd.f32 %v319, %v321
        %324 = vst [vmem:[#allocation2] sm:$0xff] %v322
        %325 = vst [vmem:[#allocation2 + $0x8] sm:$0xff] %v323
      $region48: #{uncertainty_weighted_criterion.1} parent=35 // pred_fallthru
        _
      // Predicated region
      $region49: #{uncertainty_weighted_criterion.1} parent=35 // pred_check
        %p326 = pneg %p272
      $region50: #{uncertainty_weighted_criterion.1} parent=35 // pred_check_branch
        %328 = sbr.rel (%p326) target = $region52
      $region51: #{uncertainty_weighted_criterion.1} parent=35 // pred_region
        %v329 = vld [vmem:[#allocation2] sm:$0xff]
        %v330 = vld [vmem:[#allocation2 + $0x8] sm:$0xff]
        %v331 = vadd.f32 %v329, %v330
        %332 = vadd.xlane.f32.xlu0 %v331
        %v333 = vpop.xlane.xlu0 %332
        %v334 = vrot.slane %v333, 4
        %v335 = vadd.f32 %v333, %v334
        %v336 = vrot.slane %v335, 2
        %v337 = vadd.f32 %v335, %v336
        %v338 = vrot.slane %v337, 1
        %v339 = vadd.f32 %v337, %v338
        %s340 = vtos %v339
        %v341 = vlaneseq
        %v342 = vshrl.u32 %v341, 7
        %v343 = vlaneseq
        %v344 = vand.u32 %v343, 127
        %vm345 = vcmp.eq.s32.totalorder %v342, 0
        %vm346 = vcmp.eq.s32.totalorder %v344, 0
        %vm347 = vmand %vm345, %vm346
        %v348 = vstv %s340
        %v349 = vsel %vm347, %v348, 0.0
        %350 = vst [vmem:[%s269] sm:$0xff] %v349
      $region52: #{uncertainty_weighted_criterion.1} parent=35 // pred_fallthru
        _
      %p351 = scmp.eq.s32.totalorder %s19, 0
      %p352 = pnand %p272, %p351
      %p353 = pneg %p352
      // Predicated region
      $region53: #{uncertainty_weighted_criterion.1} parent=35 // pred_check
        _
      $region54: #{uncertainty_weighted_criterion.1} parent=35 // pred_check_branch
        %355 = sbr.rel (%p352) target = $region56
      $region55: #{uncertainty_weighted_criterion.1} parent=35 // pred_region
        %v356 = vld [vmem:[%s2] sm:$0xff]
        %vm357 = vcmask 130048
        %v358 = vsel %vm357, %v356, -inf
        %359 = vmax.xlane.f32.xlu0 %v358
        %v360 = vpop.xlane.xlu0 %359
        %v361 = vsub.f32 %v356, %v360
        %v362 = vmul.f32 %v361, 1.442695
        %v363 = vpow.pop %v362
        %v364 = vsel %vm357, %v363, 0.0
        %365 = vadd.xlane.f32.xlu0 %v364
        %v366 = vpop.xlane.xlu0 %365
        %v367 = vlog2.pop %v366
        %v368 = vmul.f32 %v367, 0.6931472
        %v369 = vadd.f32 %v368, %v360
        %v370 = vlaneseq
        %v371 = vand.u32 %v370, 127
        %v372 = vld [vmem:[%s3] sm:$0xff]
        %373 = vset.pattern.permute.xlu0 0
        %374 = vperm.xlu0 %373, %v372
        %v375 = vpop.permute.xlu0 %374
        %vm376 = vcmp.eq.s32.totalorder %v371, %v375
        %v377 = vsel %vm376, %v356, 0.0
        %v378 = vsel %vm357, %v377, 0.0
        %379 = vadd.xlane.f32.xlu0 %v378
        %v380 = vpop.xlane.xlu0 %379
        %v381 = vsub.f32 %v369, %v380
        %vm382 = vcmask 7168
        %v383 = vsel %vm382, %v381, 0.0
        %384 = vadd.xlane.f32.xlu0 %v383
        %v385 = vpop.xlane.xlu0 %384
        %v386 = vrot.slane %v385, 4
        %v387 = vadd.f32 %v385, %v386
        %v388 = vrot.slane %v387, 2
        %v389 = vadd.f32 %v387, %v388
        %v390 = vrot.slane %v389, 1
        %v391 = vadd.f32 %v389, %v390
        %s392 = vtos %v391
        %v393 = vrcp.pop 8.0
        %s394 = vtos %v393
        %s395 = smul.f32 %s392, %s394
        %v396 = vlaneseq
        %v397 = vshrl.u32 %v396, 7
        %vm398 = vcmp.eq.s32.totalorder %v397, 0
        %vm399 = vcmp.eq.s32.totalorder %v371, 1
        %vm400 = vmand %vm398, %vm399
        %v401 = vld [vmem:[%s269] sm:$0xff]
        %v402 = vstv %s395
        %v403 = vsel %vm400, %v402, %v401
        %404 = vst [vmem:[%s269] sm:$0xff] %v403
      $region56: #{uncertainty_weighted_criterion.1} parent=35 // pred_fallthru
        _
      %p405 = scmp.lt.s32.totalorder %s19, 1
      %s406 = scalar_select %p405, %s19, 1
      %s407 = smul.addr %s406, 8
      %s408 = scalar_lea.vmem %s4, %s407
      // Predicated region
      $region57: #{uncertainty_weighted_criterion.1} parent=35 // pred_check
        %p409 = pneg %p151
      $region58: #{uncertainty_weighted_criterion.1} parent=35 // pred_check_branch
        %411 = sbr.rel (%p409) target = $region60
      $region59: #{uncertainty_weighted_criterion.1} parent=35 // pred_region
        _
      $region60: #{uncertainty_weighted_criterion.1} parent=35 // pred_fallthru
        _
    $region36: #{uncertainty_weighted_criterion.1} parent=5 // pred_fallthru
      _
    %p412 = scmp.le.s32.totalorder 2, %s10
    // Predicated region
    $region61: #{uncertainty_weighted_criterion.1} parent=5 // pred_check
      %p413 = pneg %p412
    $region62: #{uncertainty_weighted_criterion.1} parent=5 // pred_check_branch
      %415 = sbr.rel (%p413) target = $region64
    $region63: #{uncertainty_weighted_criterion.1} parent=5 // pred_region
      %s416 = ssub.s32 %s10, 2
      // Predicated region
      $region65: #{uncertainty_weighted_criterion.1} parent=63 // pred_check
        %p417 = pneg %p157
      $region66: #{uncertainty_weighted_criterion.1} parent=63 // pred_check_branch
        %419 = sbr.rel (%p417) target = $region68
      $region67: #{uncertainty_weighted_criterion.1} parent=63 // pred_region
        %p420 = scmp.lt.s32.totalorder %s21, 1
        %s421 = scalar_select %p420, %s21, 1
        %s422 = smul.addr %s421, 8
        %s423 = scalar_lea.vmem %s4, %s422
      $region68: #{uncertainty_weighted_criterion.1} parent=63 // pred_fallthru
        _
    $region64: #{uncertainty_weighted_criterion.1} parent=5 // pred_fallthru
      _
  $region6: #{uncertainty_weighted_criterion.1} parent=0 // loop_footer
    %s14 = sadd.s32 1, %s10
  $region7: #{uncertainty_weighted_criterion.1} parent=0 // loop_footer_branch
    %9 = sbr.rel target = $region3
  $region8: #{uncertainty_weighted_criterion.1} parent=0 // loop_exit
    _

</llo_original>
